<compile_context>
chip_gen: v7x
topology: tpu7x:2x2x1
jax: 0.10.0
libtpu: 0.0.40
codegen_flags: <defaults>
</compile_context>

<pallas_src>
import jax
import jax.numpy as jnp
from jax.experimental import pallas as pl
from jax.experimental.pallas import tpu as pltpu


# ----------------------------------------------------------------------------
# Kernels
# ----------------------------------------------------------------------------
def _channel_mix_kernel(x_ref, xx_ref, tmk_ref, tmr_ref,
                        wk_ref, wr_ref, wv_ref, o_ref):
    """Fused path: whole 4C hidden dim per row tile (weights VMEM-resident)."""
    x = x_ref[...]                        # (tq, C) f32
    xx = xx_ref[...]                      # (tq, C) f32, already time-shifted
    d = x - xx
    xk = (xx + d * tmk_ref[...]).astype(jnp.bfloat16)
    xr = (xx + d * tmr_ref[...]).astype(jnp.bfloat16)

    # key: C -> 4C, squared relu (f32 accumulation on the MXU).
    k = jnp.dot(xk, wk_ref[...], preferred_element_type=jnp.float32)   # (tq, 4C)
    k = jnp.square(jnp.maximum(k, 0.0)).astype(jnp.bfloat16)
    # value: 4C -> C.
    kv = jnp.dot(k, wv_ref[...], preferred_element_type=jnp.float32)   # (tq, C)
    # receptance gate: C -> C, sigmoid (EUP).
    r = jax.nn.sigmoid(
        jnp.dot(xr, wr_ref[...], preferred_element_type=jnp.float32))  # (tq, C)

    o_ref[...] = (r * kv).astype(o_ref.dtype)


def _channel_mix_hidden_kernel(x_ref, xx_ref, tmk_ref, tmr_ref,
                               wk_ref, wr_ref, wv_ref, o_ref,
                               xk_ref, xr_ref, acc_ref):
    """Hidden-tiled path: inner 'arbitrary' grid axis over the 4C dim.

    Per h-step: partial k = relu(xk @ Wk[:, h*tn:(h+1)*tn])^2 and
    acc += k @ Wv[h*tn:(h+1)*tn, :].  The Wr/sigmoid gate and the store happen
    only on the last h-step.  xk/xr are cached in bf16 VMEM scratch so the
    token mix is not recomputed per h-step.
    """
    h = pl.program_id(1)

    @pl.when(h == 0)
    def _():
        x = x_ref[...]
        xx = xx_ref[...]
        d = x - xx
        xk_ref[...] = (xx + d * tmk_ref[...]).astype(jnp.bfloat16)
        xr_ref[...] = (xx + d * tmr_ref[...]).astype(jnp.bfloat16)
        acc_ref[...] = jnp.zeros_like(acc_ref)

    k = jnp.dot(xk_ref[...], wk_ref[...], preferred_element_type=jnp.float32)  # (tq, tn)
    k = jnp.square(jnp.maximum(k, 0.0)).astype(jnp.bfloat16)
    acc_ref[...] += jnp.dot(k, wv_ref[...], preferred_element_type=jnp.float32)

    @pl.when(h == pl.num_programs(1) - 1)
    def _():
        r = jax.nn.sigmoid(
            jnp.dot(xr_ref[...], wr_ref[...], preferred_element_type=jnp.float32))
        o_ref[...] = (r * acc_ref[...]).astype(o_ref.dtype)


# ----------------------------------------------------------------------------
# Wrapper
# ----------------------------------------------------------------------------
def rwkv_channel_mix(x, time_mix_k, time_mix_r, wk, wr, wv, *,
                     block_rows=None, hidden_block=None):
    """x: (B,T,C); time_mix_*: (1,C) or (1,1,C); wk: (C,4C); wr: (C,C); wv: (4C,C)."""
    B, T, C = x.shape
    H = wk.shape[1]
    out_dtype = x.dtype
    out_itemsize = jnp.dtype(out_dtype).itemsize

    # ---- generation-aware VMEM budget --------------------------------------
    try:
        vmem_cap = int(pltpu.get_tpu_info().vmem_capacity_bytes)
    except Exception:
        vmem_cap = 64 * 1024 * 1024           # conservative: valid on every gen
    # Leave headroom for Mosaic internal scratch / pipeline buffers (important
    # on v7x where 64 MiB is the whole per-TC VMEM).
    vmem_limit = int(max(32 * 1024 * 1024, vmem_cap - 12 * 1024 * 1024))
    budget = int(vmem_limit * 0.85)           # what we plan user buffers against

    # ---- row tiling ----------------------------------------------------------
    if block_rows is None:
        # 512 rows/step on 128 MiB parts (v5e/v6e), 256 on 64 MiB parts (v7x).
        block_rows = 512 if vmem_cap >= 96 * 1024 * 1024 else 256
    rows = B * T
    tq = min(block_rows, rows)
    if tq < rows:
        # Keep tq a multiple of 128 (fully feeds the MXU M dim on all gens).
        tq = (tq // 128) * 128 if tq >= 128 else max(8, (tq // 8) * 8)
    n_tiles = pl.cdiv(rows, tq)
    rows_pad = n_tiles * tq
    # NOTE: ideally n_tiles >= 2 and even so v7x's two TensorCores stay balanced.

    # ---- hidden (4C) tiling --------------------------------------------------
    def _fits(tn, n_h):
        nbuf = 1 if n_h == 1 else 2                      # Wk/Wv buffer depth
        act = (16 + 2 * out_itemsize) * tq * C           # x, xx (f32) + out, double-buffered
        if n_h > 1:
            act += 8 * tq * C                            # xk/xr bf16 + kv f32 scratch
        act += 4 * tq * tn                               # (tq, tn) f32 k intermediate
        w = 2 * C * C + nbuf * 2 * (C * tn + tn * C)     # Wr (single) + Wk/Wv blocks (bf16)
        return act + w <= budget

    if hidden_block is not None:
        tn = int(hidden_block)
        assert H % tn == 0 and (tn == H or tn % 128 == 0), "bad hidden_block"
        n_h = H // tn
    elif H % 128 != 0 or _fits(H, 1):
        tn, n_h = H, 1                                   # fused path
    else:
        tn, n_h = H, 1
        cand = H // 2
        while cand >= 128:
            if H % cand == 0 and cand % 128 == 0:
                tn, n_h = cand, H // cand
                if _fits(cand, H // cand):
                    break
            cand //= 2

    # ---- operands ------------------------------------------------------------
    # Time shift in the wrapper (ZeroPad2d((0,0,1,-1))): keeps row tiling
    # trivially correct across tile AND batch boundaries.
    # TODO(synk): avoid materializing xx in HBM (read x through a second,
    # row-offset BlockSpec) for the small-C / bf16-activation memory-bound case.
    xx = jnp.pad(x, ((0, 0), (1, 0), (0, 0)))[:, :-1, :]

    x_rows = x.reshape(rows, C)
    xx_rows = xx.reshape(rows, C)
    if rows_pad != rows:
        pad = rows_pad - rows
        x_rows = jnp.pad(x_rows, ((0, pad), (0, 0)))
        xx_rows = jnp.pad(xx_rows, ((0, pad), (0, 0)))

    tmk = time_mix_k.reshape(1, C).astype(jnp.float32)
    tmr = time_mix_r.reshape(1, C).astype(jnp.float32)
    wk_b = wk.astype(jnp.bfloat16)
    wr_b = wr.astype(jnp.bfloat16)
    wv_b = wv.astype(jnp.bfloat16)

    w_elems = C * H + H * C + C * C
    cost = pl.CostEstimate(
        flops=2 * rows * w_elems,
        transcendentals=rows * C,                                  # sigmoid gate
        bytes_accessed=(2 * rows * C * 4 + rows * C * out_itemsize
                        + 2 * w_elems + 2 * C * 4),
    )

    def _call(single_buffer_consts):
        # Constant-index blocks (weights, mixing vectors) only need one buffer.
        const = (dict(pipeline_mode=pl.Buffered(1)) if single_buffer_consts else {})
        if n_h == 1:
            return pl.pallas_call(
                _channel_mix_kernel,
                out_shape=jax.ShapeDtypeStruct((rows_pad, C), out_dtype),
                grid=(n_tiles,),
                in_specs=[
                    pl.BlockSpec((tq, C), lambda i: (i, 0)),           # x rows
                    pl.BlockSpec((tq, C), lambda i: (i, 0)),           # shifted rows
                    pl.BlockSpec((1, C), lambda i: (0, 0), **const),   # time_mix_k
                    pl.BlockSpec((1, C), lambda i: (0, 0), **const),   # time_mix_r
                    pl.BlockSpec((C, H), lambda i: (0, 0), **const),   # Wk (bf16)
                    pl.BlockSpec((C, C), lambda i: (0, 0), **const),   # Wr (bf16)
                    pl.BlockSpec((H, C), lambda i: (0, 0), **const),   # Wv (bf16)
                ],
                out_specs=pl.BlockSpec((tq, C), lambda i: (i, 0)),
                compiler_params=pltpu.CompilerParams(
                    dimension_semantics=("parallel",),
                    vmem_limit_bytes=vmem_limit),
                cost_estimate=cost,
            )(x_rows, xx_rows, tmk, tmr, wk_b, wr_b, wv_b)
        return pl.pallas_call(
            _channel_mix_hidden_kernel,
            out_shape=jax.ShapeDtypeStruct((rows_pad, C), out_dtype),
            grid=(n_tiles, n_h),
            in_specs=[
                pl.BlockSpec((tq, C), lambda i, h: (i, 0)),            # x rows
                pl.BlockSpec((tq, C), lambda i, h: (i, 0)),            # shifted rows
                pl.BlockSpec((1, C), lambda i, h: (0, 0), **const),    # time_mix_k
                pl.BlockSpec((1, C), lambda i, h: (0, 0), **const),    # time_mix_r
                pl.BlockSpec((C, tn), lambda i, h: (0, h)),            # Wk column block
                pl.BlockSpec((C, C), lambda i, h: (0, 0), **const),    # Wr (bf16)
                pl.BlockSpec((tn, C), lambda i, h: (h, 0)),            # Wv row block
            ],
            out_specs=pl.BlockSpec((tq, C), lambda i, h: (i, 0)),
            scratch_shapes=[
                pltpu.VMEM((tq, C), jnp.bfloat16),                     # xk cache
                pltpu.VMEM((tq, C), jnp.bfloat16),                     # xr cache
                pltpu.VMEM((tq, C), jnp.float32),                      # kv accumulator
            ],
            compiler_params=pltpu.CompilerParams(
                dimension_semantics=("parallel", "arbitrary"),
                vmem_limit_bytes=vmem_limit),
            cost_estimate=cost,
        )(x_rows, xx_rows, tmk, tmr, wk_b, wr_b, wv_b)

    try:
        out = _call(True)
    except Exception:
        # TODO(synk): pl.Buffered(1) (single-buffered constant weight blocks)
        # rejected by this jax version; fall back to default double-buffering.
        out = _call(False)

    if rows_pad != rows:
        out = out[:rows]
    return out.reshape(B, T, C)


# ----------------------------------------------------------------------------
# Pure-JAX reference (same bf16 matmul operands / f32 accumulation as the
# kernel so the comparison is apples-to-apples; the original torch module is
# full fp32 — validate end-to-end model quality separately).
# ----------------------------------------------------------------------------
def _reference(x, time_mix_k, time_mix_r, wk, wr, wv):
    xx = jnp.pad(x, ((0, 0), (1, 0), (0, 0)))[:, :-1, :]
    tmk = time_mix_k.reshape(1, 1, -1).astype(jnp.float32)
    tmr = time_mix_r.reshape(1, 1, -1).astype(jnp.float32)
    d = x - xx
    xk = (xx + d * tmk).astype(jnp.bfloat16)
    xr = (xx + d * tmr).astype(jnp.bfloat16)
    wk_b, wr_b, wv_b = (w.astype(jnp.bfloat16) for w in (wk, wr, wv))
    k = jnp.einsum('btc,ch->bth', xk, wk_b, preferred_element_type=jnp.float32)
    k = jnp.square(jax.nn.relu(k)).astype(jnp.bfloat16)
    kv = jnp.einsum('bth,hc->btc', k, wv_b, preferred_element_type=jnp.float32)
    r = jax.nn.sigmoid(
        jnp.einsum('btc,cd->btd', xr, wr_b, preferred_element_type=jnp.float32))
    return r * kv


if __name__ == "__main__":
    key = jax.random.PRNGKey(0)

    def make_inputs(k, B, T, C, layer_id=1, n_layer=4):
        H = 4 * C
        ratio_1_to_almost0 = 1.0 - layer_id / n_layer
        idx = jnp.arange(C, dtype=jnp.float32) / C
        tmk = jnp.power(idx, ratio_1_to_almost0).reshape(1, C)
        tmr = jnp.power(idx, ratio_1_to_almost0).reshape(1, C)
        kx, kk, kr, kv = jax.random.split(k, 4)
        x = jax.random.normal(kx, (B, T, C), dtype=jnp.float32)
        wk = jax.random.normal(kk, (C, H), dtype=jnp.float32) * (1.0 / jnp.sqrt(C))
        wr = jax.random.normal(kr, (C, C), dtype=jnp.float32) * (1.0 / jnp.sqrt(C))
        wv = jax.random.normal(kv, (H, C), dtype=jnp.float32) * (1.0 / jnp.sqrt(H))
        return x, tmk, tmr, wk, wr, wv

    k1, k2 = jax.random.split(key)

    # 1) Small smoke test (fused path, n_h == 1): n_embd=32, hidden=128,
    #    batch=2, seq_len=8.  (Correctness only: C=32 underfeeds the MXU; use
    #    C>=768 for perf numbers.)
    x, tmk, tmr, wk, wr, wv = make_inputs(k1, 2, 8, 32)
    out = jax.block_until_ready(rwkv_channel_mix(x, tmk, tmr, wk, wr, wv))
    ref = _reference(x, tmk, tmr, wk, wr, wv)
    assert out.shape == x.shape
    assert jnp.allclose(out, ref, atol=1e-2, rtol=1e-2), "fused path mismatch"

    # 2) Hidden-dim tiled path (forced): n_embd=256, hidden=1024 split into
    #    four 256-wide blocks, exercising the accumulator + pl.when finalize.
    x, tmk, tmr, wk, wr, wv = make_inputs(k2, 2, 16, 256)
    out = jax.block_until_ready(
        rwkv_channel_mix(x, tmk, tmr, wk, wr, wv, hidden_block=256))
    ref = _reference(x, tmk, tmr, wk, wr, wv)
    assert out.shape == x.shape
    assert jnp.allclose(out, ref, atol=1e-2, rtol=1e-2), "hidden-tiled path mismatch"

    print("KERNEL_OK")
</pallas_src>

<mosaic_0001>
module attributes {stable_mosaic.version = 11 : i64} {
  func.func @_channel_mix_kernel(%arg0: i32, %arg1: memref<16x32xf32, #tpu.memory_space<vmem>>, %arg2: memref<16x32xf32, #tpu.memory_space<vmem>>, %arg3: memref<1x32xf32, #tpu.memory_space<vmem>>, %arg4: memref<1x32xf32, #tpu.memory_space<vmem>>, %arg5: memref<32x128xbf16, #tpu.memory_space<vmem>>, %arg6: memref<32x32xbf16, #tpu.memory_space<vmem>>, %arg7: memref<128x32xbf16, #tpu.memory_space<vmem>>, %arg8: memref<16x32xf32, #tpu.memory_space<vmem>>) attributes {dimension_semantics = [#tpu.dimension_semantics<parallel>], iteration_bounds = array<i64: 1>, scalar_prefetch = 0 : i64, scratch_operands = 0 : i64, tpu.core_type = #tpu.core_type<tc>, window_params = [{transform_indices = @transform_0, window_bounds = array<i64: 16, 32>}, {transform_indices = @transform_1, window_bounds = array<i64: 16, 32>}, {pipeline_mode = #tpu.pipeline_mode<synchronous>, transform_indices = @transform_2, window_bounds = array<i64: 1, 32>}, {pipeline_mode = #tpu.pipeline_mode<synchronous>, transform_indices = @transform_3, window_bounds = array<i64: 1, 32>}, {pipeline_mode = #tpu.pipeline_mode<synchronous>, transform_indices = @transform_4, window_bounds = array<i64: 32, 128>}, {pipeline_mode = #tpu.pipeline_mode<synchronous>, transform_indices = @transform_5, window_bounds = array<i64: 32, 32>}, {pipeline_mode = #tpu.pipeline_mode<synchronous>, transform_indices = @transform_6, window_bounds = array<i64: 128, 32>}, {transform_indices = @transform_7, window_bounds = array<i64: 16, 32>}]} {
    %c0 = arith.constant 0 : index
    %c0_0 = arith.constant 0 : index
    %0 = vector.load %arg1[%c0, %c0_0] : memref<16x32xf32, #tpu.memory_space<vmem>>, vector<16x32xf32>
    %c0_1 = arith.constant 0 : index
    %c0_2 = arith.constant 0 : index
    %1 = vector.load %arg2[%c0_1, %c0_2] : memref<16x32xf32, #tpu.memory_space<vmem>>, vector<16x32xf32>
    %2 = arith.subf %0, %1 : vector<16x32xf32>
    %c0_3 = arith.constant 0 : index
    %c0_4 = arith.constant 0 : index
    %3 = vector.load %arg3[%c0_3, %c0_4] : memref<1x32xf32, #tpu.memory_space<vmem>>, vector<1x32xf32>
    %4 = vector.broadcast %3 : vector<1x32xf32> to vector<16x32xf32>
    %5 = arith.mulf %2, %4 : vector<16x32xf32>
    %6 = arith.addf %1, %5 : vector<16x32xf32>
    %7 = arith.truncf %6 : vector<16x32xf32> to vector<16x32xbf16>
    %c0_5 = arith.constant 0 : index
    %c0_6 = arith.constant 0 : index
    %8 = vector.load %arg4[%c0_5, %c0_6] : memref<1x32xf32, #tpu.memory_space<vmem>>, vector<1x32xf32>
    %9 = vector.broadcast %8 : vector<1x32xf32> to vector<16x32xf32>
    %10 = arith.mulf %2, %9 : vector<16x32xf32>
    %11 = arith.addf %1, %10 : vector<16x32xf32>
    %12 = arith.truncf %11 : vector<16x32xf32> to vector<16x32xbf16>
    %c0_7 = arith.constant 0 : index
    %c0_8 = arith.constant 0 : index
    %13 = vector.load %arg5[%c0_7, %c0_8] : memref<32x128xbf16, #tpu.memory_space<vmem>>, vector<32x128xbf16>
    %cst = arith.constant dense<0.000000e+00> : vector<16x128xf32>
    %14 = tpu.matmul %7, %13, %cst {dimension_numbers = #tpu.dot_dimension_numbers<[1], [0], [0], [1], [0, 0, 1, 1], [], []>} : vector<16x32xbf16>, vector<32x128xbf16>, vector<16x128xf32> -> vector<16x128xf32>
    %cst_9 = arith.constant 0.000000e+00 : f32
    %15 = vector.broadcast %cst_9 : f32 to vector<16x128xf32>
    %16 = arith.maximumf %14, %15 : vector<16x128xf32>
    %17 = arith.mulf %16, %16 : vector<16x128xf32>
    %18 = arith.truncf %17 : vector<16x128xf32> to vector<16x128xbf16>
    %c0_10 = arith.constant 0 : index
    %c0_11 = arith.constant 0 : index
    %19 = vector.load %arg7[%c0_10, %c0_11] : memref<128x32xbf16, #tpu.memory_space<vmem>>, vector<128x32xbf16>
    %cst_12 = arith.constant dense<0.000000e+00> : vector<16x32xf32>
    %20 = tpu.matmul %18, %19, %cst_12 {dimension_numbers = #tpu.dot_dimension_numbers<[1], [0], [0], [1], [0, 0, 1, 1], [], []>} : vector<16x128xbf16>, vector<128x32xbf16>, vector<16x32xf32> -> vector<16x32xf32>
    %c0_13 = arith.constant 0 : index
    %c0_14 = arith.constant 0 : index
    %21 = vector.load %arg6[%c0_13, %c0_14] : memref<32x32xbf16, #tpu.memory_space<vmem>>, vector<32x32xbf16>
    %cst_15 = arith.constant dense<0.000000e+00> : vector<16x32xf32>
    %22 = tpu.matmul %12, %21, %cst_15 {dimension_numbers = #tpu.dot_dimension_numbers<[1], [0], [0], [1], [0, 0, 1, 1], [], []>} : vector<16x32xbf16>, vector<32x32xbf16>, vector<16x32xf32> -> vector<16x32xf32>
    %23 = arith.negf %22 : vector<16x32xf32>
    %24 = math.exp %23 : vector<16x32xf32>
    %cst_16 = arith.constant 1.000000e+00 : f32
    %25 = vector.broadcast %cst_16 : f32 to vector<16x32xf32>
    %26 = arith.addf %25, %24 : vector<16x32xf32>
    %27 = arith.divf %25, %26 : vector<16x32xf32>
    %28 = arith.mulf %27, %20 : vector<16x32xf32>
    %c0_17 = arith.constant 0 : index
    %c0_18 = arith.constant 0 : index
    %29 = vector.load %arg8[%c0_17, %c0_18] : memref<16x32xf32, #tpu.memory_space<vmem>>, vector<16x32xf32>
    tpu.vector_store %arg8[%c0_17, %c0_18], %28 {strides = array<i32>} : memref<16x32xf32, #tpu.memory_space<vmem>>, vector<16x32xf32>,
    return
  }
  func.func @transform_0(%arg0: i32) -> (i32, i32) {
    %c0_i32 = arith.constant 0 : i32
    %c0_i32_0 = arith.constant 0 : i32
    return %arg0, %c0_i32 : i32, i32
  }
  func.func @transform_1(%arg0: i32) -> (i32, i32) {
    %c0_i32 = arith.constant 0 : i32
    %c0_i32_0 = arith.constant 0 : i32
    return %arg0, %c0_i32 : i32, i32
  }
  func.func @transform_2(%arg0: i32) -> (i32, i32) {
    %c0_i32 = arith.constant 0 : i32
    %c0_i32_0 = arith.constant 0 : i32
    %c0_i32_1 = arith.constant 0 : i32
    return %c0_i32, %c0_i32_0 : i32, i32
  }
  func.func @transform_3(%arg0: i32) -> (i32, i32) {
    %c0_i32 = arith.constant 0 : i32
    %c0_i32_0 = arith.constant 0 : i32
    %c0_i32_1 = arith.constant 0 : i32
    return %c0_i32, %c0_i32_0 : i32, i32
  }
  func.func @transform_4(%arg0: i32) -> (i32, i32) {
    %c0_i32 = arith.constant 0 : i32
    %c0_i32_0 = arith.constant 0 : i32
    %c0_i32_1 = arith.constant 0 : i32
    return %c0_i32, %c0_i32_0 : i32, i32
  }
  func.func @transform_5(%arg0: i32) -> (i32, i32) {
    %c0_i32 = arith.constant 0 : i32
    %c0_i32_0 = arith.constant 0 : i32
    %c0_i32_1 = arith.constant 0 : i32
    return %c0_i32, %c0_i32_0 : i32, i32
  }
  func.func @transform_6(%arg0: i32) -> (i32, i32) {
    %c0_i32 = arith.constant 0 : i32
    %c0_i32_0 = arith.constant 0 : i32
    %c0_i32_1 = arith.constant 0 : i32
    return %c0_i32, %c0_i32_0 : i32, i32
  }
  func.func @transform_7(%arg0: i32) -> (i32, i32) {
    %c0_i32 = arith.constant 0 : i32
    %c0_i32_0 = arith.constant 0 : i32
    return %arg0, %c0_i32 : i32, i32
  }
}

module attributes {stable_mosaic.version = 11 : i64} {
  func.func @_channel_mix_kernel(%arg0: i32, %arg1: memref<16x32xf32, #tpu.memory_space<vmem>>, %arg2: memref<16x32xf32, #tpu.memory_space<vmem>>, %arg3: memref<1x32xf32, #tpu.memory_space<vmem>>, %arg4: memref<1x32xf32, #tpu.memory_space<vmem>>, %arg5: memref<32x128xbf16, #tpu.memory_space<vmem>>, %arg6: memref<32x32xbf16, #tpu.memory_space<vmem>>, %arg7: memref<128x32xbf16, #tpu.memory_space<vmem>>, %arg8: memref<16x32xf32, #tpu.memory_space<vmem>>) attributes {dimension_semantics = [#tpu.dimension_semantics<parallel>], iteration_bounds = array<i64: 1>, scalar_prefetch = 0 : i64, scratch_operands = 0 : i64, tpu.core_type = #tpu.core_type<tc>, window_params = [{transform_indices = @transform_0, window_bounds = array<i64: 16, 32>}, {transform_indices = @transform_1, window_bounds = array<i64: 16, 32>}, {pipeline_mode = #tpu.pipeline_mode<synchronous>, transform_indices = @transform_2, window_bounds = array<i64: 1, 32>}, {pipeline_mode = #tpu.pipeline_mode<synchronous>, transform_indices = @transform_3, window_bounds = array<i64: 1, 32>}, {pipeline_mode = #tpu.pipeline_mode<synchronous>, transform_indices = @transform_4, window_bounds = array<i64: 32, 128>}, {pipeline_mode = #tpu.pipeline_mode<synchronous>, transform_indices = @transform_5, window_bounds = array<i64: 32, 32>}, {pipeline_mode = #tpu.pipeline_mode<synchronous>, transform_indices = @transform_6, window_bounds = array<i64: 128, 32>}, {transform_indices = @transform_7, window_bounds = array<i64: 16, 32>}]} {
    %c0 = arith.constant 0 : index
    %c0_0 = arith.constant 0 : index
    %0 = vector.load %arg1[%c0, %c0_0] : memref<16x32xf32, #tpu.memory_space<vmem>>, vector<16x32xf32>
    %c0_1 = arith.constant 0 : index
    %c0_2 = arith.constant 0 : index
    %1 = vector.load %arg2[%c0_1, %c0_2] : memref<16x32xf32, #tpu.memory_space<vmem>>, vector<16x32xf32>
    %2 = arith.subf %0, %1 : vector<16x32xf32>
    %c0_3 = arith.constant 0 : index
    %c0_4 = arith.constant 0 : index
    %3 = vector.load %arg3[%c0_3, %c0_4] : memref<1x32xf32, #tpu.memory_space<vmem>>, vector<1x32xf32>
    %4 = vector.broadcast %3 : vector<1x32xf32> to vector<16x32xf32>
    %5 = arith.mulf %2, %4 : vector<16x32xf32>
    %6 = arith.addf %1, %5 : vector<16x32xf32>
    %7 = arith.truncf %6 : vector<16x32xf32> to vector<16x32xbf16>
    %c0_5 = arith.constant 0 : index
    %c0_6 = arith.constant 0 : index
    %8 = vector.load %arg4[%c0_5, %c0_6] : memref<1x32xf32, #tpu.memory_space<vmem>>, vector<1x32xf32>
    %9 = vector.broadcast %8 : vector<1x32xf32> to vector<16x32xf32>
    %10 = arith.mulf %2, %9 : vector<16x32xf32>
    %11 = arith.addf %1, %10 : vector<16x32xf32>
    %12 = arith.truncf %11 : vector<16x32xf32> to vector<16x32xbf16>
    %c0_7 = arith.constant 0 : index
    %c0_8 = arith.constant 0 : index
    %13 = vector.load %arg5[%c0_7, %c0_8] : memref<32x128xbf16, #tpu.memory_space<vmem>>, vector<32x128xbf16>
    %cst = arith.constant dense<0.000000e+00> : vector<16x128xf32>
    %14 = tpu.matmul %7, %13, %cst {dimension_numbers = #tpu.dot_dimension_numbers<[1], [0], [0], [1], [0, 0, 1, 1], [], []>} : vector<16x32xbf16>, vector<32x128xbf16>, vector<16x128xf32> -> vector<16x128xf32>
    %cst_9 = arith.constant 0.000000e+00 : f32
    %15 = vector.broadcast %cst_9 : f32 to vector<16x128xf32>
    %16 = arith.maximumf %14, %15 : vector<16x128xf32>
    %17 = arith.mulf %16, %16 : vector<16x128xf32>
    %18 = arith.truncf %17 : vector<16x128xf32> to vector<16x128xbf16>
    %c0_10 = arith.constant 0 : index
    %c0_11 = arith.constant 0 : index
    %19 = vector.load %arg7[%c0_10, %c0_11] : memref<128x32xbf16, #tpu.memory_space<vmem>>, vector<128x32xbf16>
    %cst_12 = arith.constant dense<0.000000e+00> : vector<16x32xf32>
    %20 = tpu.matmul %18, %19, %cst_12 {dimension_numbers = #tpu.dot_dimension_numbers<[1], [0], [0], [1], [0, 0, 1, 1], [], []>} : vector<16x128xbf16>, vector<128x32xbf16>, vector<16x32xf32> -> vector<16x32xf32>
    %c0_13 = arith.constant 0 : index
    %c0_14 = arith.constant 0 : index
    %21 = vector.load %arg6[%c0_13, %c0_14] : memref<32x32xbf16, #tpu.memory_space<vmem>>, vector<32x32xbf16>
    %cst_15 = arith.constant dense<0.000000e+00> : vector<16x32xf32>
    %22 = tpu.matmul %12, %21, %cst_15 {dimension_numbers = #tpu.dot_dimension_numbers<[1], [0], [0], [1], [0, 0, 1, 1], [], []>} : vector<16x32xbf16>, vector<32x32xbf16>, vector<16x32xf32> -> vector<16x32xf32>
    %23 = arith.negf %22 : vector<16x32xf32>
    %24 = math.exp %23 : vector<16x32xf32>
    %cst_16 = arith.constant 1.000000e+00 : f32
    %25 = vector.broadcast %cst_16 : f32 to vector<16x32xf32>
    %26 = arith.addf %25, %24 : vector<16x32xf32>
    %27 = arith.divf %25, %26 : vector<16x32xf32>
    %28 = arith.mulf %27, %20 : vector<16x32xf32>
    %c0_17 = arith.constant 0 : index
    %c0_18 = arith.constant 0 : index
    %29 = vector.load %arg8[%c0_17, %c0_18] : memref<16x32xf32, #tpu.memory_space<vmem>>, vector<16x32xf32>
    tpu.vector_store %arg8[%c0_17, %c0_18], %28 {strides = array<i32>} : memref<16x32xf32, #tpu.memory_space<vmem>>, vector<16x32xf32>,
    return
  }
  func.func @transform_0(%arg0: i32) -> (i32, i32) {
    %c0_i32 = arith.constant 0 : i32
    %c0_i32_0 = arith.constant 0 : i32
    return %arg0, %c0_i32 : i32, i32
  }
  func.func @transform_1(%arg0: i32) -> (i32, i32) {
    %c0_i32 = arith.constant 0 : i32
    %c0_i32_0 = arith.constant 0 : i32
    return %arg0, %c0_i32 : i32, i32
  }
  func.func @transform_2(%arg0: i32) -> (i32, i32) {
    %c0_i32 = arith.constant 0 : i32
    %c0_i32_0 = arith.constant 0 : i32
    %c0_i32_1 = arith.constant 0 : i32
    return %c0_i32, %c0_i32_0 : i32, i32
  }
  func.func @transform_3(%arg0: i32) -> (i32, i32) {
    %c0_i32 = arith.constant 0 : i32
    %c0_i32_0 = arith.constant 0 : i32
    %c0_i32_1 = arith.constant 0 : i32
    return %c0_i32, %c0_i32_0 : i32, i32
  }
  func.func @transform_4(%arg0: i32) -> (i32, i32) {
    %c0_i32 = arith.constant 0 : i32
    %c0_i32_0 = arith.constant 0 : i32
    %c0_i32_1 = arith.constant 0 : i32
    return %c0_i32, %c0_i32_0 : i32, i32
  }
  func.func @transform_5(%arg0: i32) -> (i32, i32) {
    %c0_i32 = arith.constant 0 : i32
    %c0_i32_0 = arith.constant 0 : i32
    %c0_i32_1 = arith.constant 0 : i32
    return %c0_i32, %c0_i32_0 : i32, i32
  }
  func.func @transform_6(%arg0: i32) -> (i32, i32) {
    %c0_i32 = arith.constant 0 : i32
    %c0_i32_0 = arith.constant 0 : i32
    %c0_i32_1 = arith.constant 0 : i32
    return %c0_i32, %c0_i32_0 : i32, i32
  }
  func.func @transform_7(%arg0: i32) -> (i32, i32) {
    %c0_i32 = arith.constant 0 : i32
    %c0_i32_0 = arith.constant 0 : i32
    return %arg0, %c0_i32 : i32, i32
  }
}

</mosaic_0001>

<llo_original>
// kernel: tpu_custom_call.1
$region0: #{tpu_custom_call.1}
  #allocation0 [shape = 'u32[]', space=smem, size = 0x4, offset = 0x4, fixed_abs, tag = 'smem constant byte address 0x4 - core index']
  #allocation1 [shape = 'u32[144,128]{1,0:T(1,128)}', space=vmem, size = 0x12000, scoped, tag = 'internal scratch']
  %s0 = inlined_call_operand.vmem [shape: f32[16,32], index: 0, kind: input, shape index: {}]
  %s1 = inlined_call_operand.vmem [shape: f32[16,32], index: 1, kind: input, shape index: {}]
  %s2 = inlined_call_operand.vmem [shape: f32[1,32], index: 2, kind: input, shape index: {}]
  %s3 = inlined_call_operand.vmem [shape: f32[1,32], index: 3, kind: input, shape index: {}]
  %s4 = inlined_call_operand.vmem [shape: bf16[32,128], index: 4, kind: input, shape index: {}]
  %s5 = inlined_call_operand.vmem [shape: bf16[32,32], index: 5, kind: input, shape index: {}]
  %s6 = inlined_call_operand.vmem [shape: bf16[128,32], index: 6, kind: input, shape index: {}]
  %s7 = inlined_call_operand.hbm [shape: f32[16,32], index: 7, kind: output, shape index: {}]
  %s8 = sld [smem:[#allocation0]]
  $region38: #{tpu_custom_call.1} parent=0
    _
  %s10 = ssub.s32 1, %s8
  %s11 = scalar_select 0, %s10, %s8
  $region1: #{tpu_custom_call.1} parent=0
    #allocation2 [shape = 'u8[8192]{0}', space=vmem, size = 0x2000, scoped, tag = 'output window, operand 0, single buffered']
    #allocation3 [shape = 's32[1]{0}', space=sflag, size = 0x4, scoped, tag = 'scoped memory for tpu_custom_call.1']
    %12 = vsyncpa [#allocation3], 0
    // Predicated region
    $region2: #{tpu_custom_call.1} parent=1 // pred_check
      _
    $region3: #{tpu_custom_call.1} parent=1 // pred_check_branch
      %14 = sbr.rel (0) target = $region5
    $region4: #{tpu_custom_call.1} parent=1 // pred_region
      _
    $region5: #{tpu_custom_call.1} parent=1 // pred_fallthru
      _
    // Predicated region
    $region6: #{tpu_custom_call.1} parent=1 // pred_check
      _
    $region7: #{tpu_custom_call.1} parent=1 // pred_check_branch
      %16 = sbr.rel (0) target = $region9
    $region8: #{tpu_custom_call.1} parent=1 // pred_region
      _
    $region9: #{tpu_custom_call.1} parent=1 // pred_fallthru
      _
    // Predicated region
    $region10: #{tpu_custom_call.1} parent=1 // pred_check
      _
    $region11: #{tpu_custom_call.1} parent=1 // pred_check_branch
      %18 = sbr.rel (0) target = $region13
    $region12: #{tpu_custom_call.1} parent=1 // pred_region
      _
    $region13: #{tpu_custom_call.1} parent=1 // pred_fallthru
      _
    // Predicated region
    $region14: #{tpu_custom_call.1} parent=1 // pred_check
      _
    $region15: #{tpu_custom_call.1} parent=1 // pred_check_branch
      %20 = sbr.rel (0) target = $region17
    $region16: #{tpu_custom_call.1} parent=1 // pred_region
      _
    $region17: #{tpu_custom_call.1} parent=1 // pred_fallthru
      _
    // Predicated region
    $region18: #{tpu_custom_call.1} parent=1 // pred_check
      _
    $region19: #{tpu_custom_call.1} parent=1 // pred_check_branch
      %22 = sbr.rel (0) target = $region21
    $region20: #{tpu_custom_call.1} parent=1 // pred_region
      _
    $region21: #{tpu_custom_call.1} parent=1 // pred_fallthru
      _
    // Predicated region
    $region22: #{tpu_custom_call.1} parent=1 // pred_check
      _
    $region23: #{tpu_custom_call.1} parent=1 // pred_check_branch
      %24 = sbr.rel (0) target = $region25
    $region24: #{tpu_custom_call.1} parent=1 // pred_region
      _
    $region25: #{tpu_custom_call.1} parent=1 // pred_fallthru
      _
    // Predicated region
    $region26: #{tpu_custom_call.1} parent=1 // pred_check
      _
    $region27: #{tpu_custom_call.1} parent=1 // pred_check_branch
      %26 = sbr.rel (0) target = $region29
    $region28: #{tpu_custom_call.1} parent=1 // pred_region
      _
    $region29: #{tpu_custom_call.1} parent=1 // pred_fallthru
      _
    %v28 = vld [vmem:[%s0] sm:$0xff]
    %v29 = vld [vmem:[%s0 + $0x8] sm:$0xff]
    %v30 = vld [vmem:[%s1] sm:$0xff]
    %v31 = vld [vmem:[%s1 + $0x8] sm:$0xff]
    %v32 = vsub.f32 %v28, %v30
    %v33 = vsub.f32 %v29, %v31
    %v34 = vld [vmem:[%s2] sm:$0x1]
    %v36 = vlaneseq
    %v37 = vshrl.u32 %v36, 7
    %v38 = vsub.s32 0, %v37
    %v39 = vrot.slane %v34, %v38
    %v41 = vmul.f32 %v32, %v39
    %v42 = vmul.f32 %v33, %v39
    %v43 = vadd.f32 %v30, %v41
    %v44 = vadd.f32 %v31, %v42
    %v45 = vpack.c.bf16 %v44, %v43
    %v46 = vld [vmem:[%s3] sm:$0x1]
    %v48 = vlaneseq
    %v49 = vshrl.u32 %v48, 7
    %v50 = vsub.s32 0, %v49
    %v51 = vrot.slane %v46, %v50
    %v53 = vmul.f32 %v32, %v51
    %v54 = vmul.f32 %v33, %v51
    %v55 = vadd.f32 %v30, %v53
    %v56 = vadd.f32 %v31, %v54
    %v57 = vpack.c.bf16 %v56, %v55
    %v58 = vld [vmem:[%s4] sm:$0xf]
    %v59 = vld [vmem:[%s4 + $0x4] sm:$0xf]
    %v60 = vld [vmem:[%s4 + $0x8] sm:$0xf]
    %v61 = vld [vmem:[%s4 + $0xc] sm:$0xf]
    %v66 = vunpack.c.l.b16 %v58
    %v67 = vunpack.c.l.b16 %v59
    %v68 = vunpack.c.l.b16 %v60
    %v69 = vunpack.c.l.b16 %v61
    %v70 = vpack.c.b16 %v67, %v66
    %v71 = vpack.c.b16 %v69, %v68
    %vm74 = vcmask 261120
    %v76 = vsel %vm74, %v45, 0
    %78 = vmatprep.subr.bf16.mxu0 0
    %79 = vmatpush1.bf16.msra.mxu0 %v70
    %80 = vmatprep.subr.bf16.mxu0 0
    %81 = vmatpush1.bf16.msra.mxu0 %v71
    %82 = vmatprep.subr.bf16.mxu0 0
    %83 = vmatpush1.bf16.msra.mxu0 0
    %84 = vmatprep.subr.bf16.mxu0 0
    %85 = vmatpush1.bf16.msra.mxu0 0
    %86 = vmatprep.subr.bf16.mxu0 0
    %87 = vmatpush1.bf16.msra.mxu0 0
    %88 = vmatprep.subr.bf16.mxu0 0
    %89 = vmatpush1.bf16.msra.mxu0 0
    %90 = vmatprep.subr.bf16.mxu0 0
    %91 = vmatpush1.bf16.msra.mxu0 0
    %92 = vmatprep.subr.bf16.mxu0 0
    %93 = vmatpush1.bf16.msra.mxu0 0
    %94 = vmatprep.subr.bf16.mxu0 0
    %95 = vmatpush1.bf16.msra.mxu0 0
    %96 = vmatprep.subr.bf16.mxu0 0
    %97 = vmatpush1.bf16.msra.mxu0 0
    %98 = vmatprep.subr.bf16.mxu0 0
    %99 = vmatpush1.bf16.msra.mxu0 0
    %100 = vmatprep.subr.bf16.mxu0 0
    %101 = vmatpush1.bf16.msra.mxu0 0
    %102 = vmatprep.subr.bf16.mxu0 0
    %103 = vmatpush1.bf16.msra.mxu0 0
    %104 = vmatprep.subr.bf16.mxu0 0
    %105 = vmatpush1.bf16.msra.mxu0 0
    %106 = vmatprep.subr.bf16.mxu0 0
    %107 = vmatpush1.bf16.msra.mxu0 0
    %108 = vmatprep.subr.bf16.mxu0 0
    %109 = vmatpush1.bf16.msra.mxu0 0
    %110 = vmatprep.mubr.bf16.mxu0 0
    %111 = vmatmul.mubr.bf16.gmra.mrb[0].mxu0 %v76
    %v112 = vpop.f32.mrb[0].mxu0
    %v113 = vadd.f32 0.0, %v112
    %v114 = vpop.f32.mrb[0].mxu0
    %v115 = vpop.f32.mrb[0].mxu0
    %v116 = vadd.f32 0.0, %v115
    %v117 = vpop.f32.mrb[0].mxu0
    %118 = vdwg.mxu0
    %v119 = vmax.f32 %v113, 0.0
    %v120 = vmax.f32 %v116, 0.0
    %v121 = vmul.f32 %v119, %v119
    %v122 = vmul.f32 %v120, %v120
    %v123 = vpack.c.bf16 %v122, %v121
    %v124 = vld [vmem:[%s6] sm:$0xf]
    %v125 = vld [vmem:[%s6 + $0x4] sm:$0xf]
    %v126 = vld [vmem:[%s6 + $0x8] sm:$0xf]
    %v127 = vld [vmem:[%s6 + $0xc] sm:$0xf]
    %v128 = vld [vmem:[%s6 + $0x10] sm:$0xf]
    %v129 = vld [vmem:[%s6 + $0x14] sm:$0xf]
    %v130 = vld [vmem:[%s6 + $0x18] sm:$0xf]
    %v131 = vld [vmem:[%s6 + $0x1c] sm:$0xf]
    %v132 = vld [vmem:[%s6 + $0x20] sm:$0xf]
    %v133 = vld [vmem:[%s6 + $0x24] sm:$0xf]
    %v134 = vld [vmem:[%s6 + $0x28] sm:$0xf]
    %v135 = vld [vmem:[%s6 + $0x2c] sm:$0xf]
    %v136 = vld [vmem:[%s6 + $0x30] sm:$0xf]
    %v137 = vld [vmem:[%s6 + $0x34] sm:$0xf]
    %v138 = vld [vmem:[%s6 + $0x38] sm:$0xf]
    %v139 = vld [vmem:[%s6 + $0x3c] sm:$0xf]
    %v156 = vunpack.c.l.b16 %v124
    %v157 = vunpack.c.l.b16 %v125
    %v158 = vunpack.c.l.b16 %v126
    %v159 = vunpack.c.l.b16 %v127
    %v160 = vunpack.c.l.b16 %v128
    %v161 = vunpack.c.l.b16 %v129
    %v162 = vunpack.c.l.b16 %v130
    %v163 = vunpack.c.l.b16 %v131
    %v164 = vunpack.c.l.b16 %v132
    %v165 = vunpack.c.l.b16 %v133
    %v166 = vunpack.c.l.b16 %v134
    %v167 = vunpack.c.l.b16 %v135
    %v168 = vunpack.c.l.b16 %v136
    %v169 = vunpack.c.l.b16 %v137
    %v170 = vunpack.c.l.b16 %v138
    %v171 = vunpack.c.l.b16 %v139
    %v172 = vpack.c.b16 %v157, %v156
    %v173 = vpack.c.b16 %v159, %v158
    %v174 = vpack.c.b16 %v161, %v160
    %v175 = vpack.c.b16 %v163, %v162
    %v176 = vpack.c.b16 %v165, %v164
    %v177 = vpack.c.b16 %v167, %v166
    %v178 = vpack.c.b16 %v169, %v168
    %v179 = vpack.c.b16 %v171, %v170
    %188 = vmatprep.subr.bf16.mxu0 0
    %189 = vmatpush1.bf16.msra.mxu0 %v172
    %190 = vmatprep.subr.bf16.mxu0 0
    %191 = vmatpush1.bf16.msra.mxu0 %v173
    %192 = vmatprep.subr.bf16.mxu0 0
    %193 = vmatpush1.bf16.msra.mxu0 %v174
    %194 = vmatprep.subr.bf16.mxu0 0
    %195 = vmatpush1.bf16.msra.mxu0 %v175
    %196 = vmatprep.subr.bf16.mxu0 0
    %197 = vmatpush1.bf16.msra.mxu0 %v176
    %198 = vmatprep.subr.bf16.mxu0 0
    %199 = vmatpush1.bf16.msra.mxu0 %v177
    %200 = vmatprep.subr.bf16.mxu0 0
    %201 = vmatpush1.bf16.msra.mxu0 %v178
    %202 = vmatprep.subr.bf16.mxu0 0
    %203 = vmatpush1.bf16.msra.mxu0 %v179
    %204 = vmatprep.subr.bf16.mxu0 0
    %205 = vmatpush1.bf16.msra.mxu0 0
    %206 = vmatprep.subr.bf16.mxu0 0
    %207 = vmatpush1.bf16.msra.mxu0 0
    %208 = vmatprep.subr.bf16.mxu0 0
    %209 = vmatpush1.bf16.msra.mxu0 0
    %210 = vmatprep.subr.bf16.mxu0 0
    %211 = vmatpush1.bf16.msra.mxu0 0
    %212 = vmatprep.subr.bf16.mxu0 0
    %213 = vmatpush1.bf16.msra.mxu0 0
    %214 = vmatprep.subr.bf16.mxu0 0
    %215 = vmatpush1.bf16.msra.mxu0 0
    %216 = vmatprep.subr.bf16.mxu0 0
    %217 = vmatpush1.bf16.msra.mxu0 0
    %218 = vmatprep.subr.bf16.mxu0 0
    %219 = vmatpush1.bf16.msra.mxu0 0
    %220 = vmatprep.mubr.bf16.mxu0 0
    %221 = vmatmul.mubr.bf16.gmra.mrb[0].mxu0 %v123
    %v222 = vpop.f32.mrb[0].mxu0
    %v223 = vadd.f32 0.0, %v222
    %v224 = vpop.f32.mrb[0].mxu0
    %v225 = vpop.f32.mrb[0].mxu0
    %v226 = vadd.f32 0.0, %v225
    %v227 = vpop.f32.mrb[0].mxu0
    %228 = vdwg.mxu0
    %v229 = vld [vmem:[%s5] sm:$0xf]
    %v230 = vld [vmem:[%s5 + $0x4] sm:$0xf]
    %v231 = vld [vmem:[%s5 + $0x8] sm:$0xf]
    %v232 = vld [vmem:[%s5 + $0xc] sm:$0xf]
    %v237 = vunpack.c.l.b16 %v229
    %v238 = vunpack.c.l.b16 %v230
    %v239 = vunpack.c.l.b16 %v231
    %v240 = vunpack.c.l.b16 %v232
    %v241 = vpack.c.b16 %v238, %v237
    %v242 = vpack.c.b16 %v240, %v239
    %v246 = vsel %vm74, %v57, 0
    %248 = vmatprep.subr.bf16.mxu0 0
    %249 = vmatpush1.bf16.msra.mxu0 %v241
    %250 = vmatprep.subr.bf16.mxu0 0
    %251 = vmatpush1.bf16.msra.mxu0 %v242
    %252 = vmatprep.subr.bf16.mxu0 0
    %253 = vmatpush1.bf16.msra.mxu0 0
    %254 = vmatprep.subr.bf16.mxu0 0
    %255 = vmatpush1.bf16.msra.mxu0 0
    %256 = vmatprep.subr.bf16.mxu0 0
    %257 = vmatpush1.bf16.msra.mxu0 0
    %258 = vmatprep.subr.bf16.mxu0 0
    %259 = vmatpush1.bf16.msra.mxu0 0
    %260 = vmatprep.subr.bf16.mxu0 0
    %261 = vmatpush1.bf16.msra.mxu0 0
    %262 = vmatprep.subr.bf16.mxu0 0
    %263 = vmatpush1.bf16.msra.mxu0 0
    %264 = vmatprep.subr.bf16.mxu0 0
    %265 = vmatpush1.bf16.msra.mxu0 0
    %266 = vmatprep.subr.bf16.mxu0 0
    %267 = vmatpush1.bf16.msra.mxu0 0
    %268 = vmatprep.subr.bf16.mxu0 0
    %269 = vmatpush1.bf16.msra.mxu0 0
    %270 = vmatprep.subr.bf16.mxu0 0
    %271 = vmatpush1.bf16.msra.mxu0 0
    %272 = vmatprep.subr.bf16.mxu0 0
    %273 = vmatpush1.bf16.msra.mxu0 0
    %274 = vmatprep.subr.bf16.mxu0 0
    %275 = vmatpush1.bf16.msra.mxu0 0
    %276 = vmatprep.subr.bf16.mxu0 0
    %277 = vmatpush1.bf16.msra.mxu0 0
    %278 = vmatprep.subr.bf16.mxu0 0
    %279 = vmatpush1.bf16.msra.mxu0 0
    %280 = vmatprep.mubr.bf16.mxu0 0
    %281 = vmatmul.mubr.bf16.gmra.mrb[0].mxu0 %v246
    %v282 = vpop.f32.mrb[0].mxu0
    %v283 = vadd.f32 0.0, %v282
    %v284 = vpop.f32.mrb[0].mxu0
    %v285 = vpop.f32.mrb[0].mxu0
    %v286 = vadd.f32 0.0, %v285
    %v287 = vpop.f32.mrb[0].mxu0
    %288 = vdwg.mxu0
    %v289 = vxor.u32 %v283, 2147483648
    %v290 = vxor.u32 %v286, 2147483648
    %v291 = vmul.f32 %v289, 1.442695
    %v292 = vpow.pop %v291
    %v293 = vmul.f32 %v290, 1.442695
    %v294 = vpow.pop %v293
    %v295 = vadd.f32 %v292, 1.0
    %v296 = vadd.f32 %v294, 1.0
    %v297 = vrcp.pop %v295
    %v298 = vmul.f32 1.0, %v297
    %v299 = vrcp.pop %v296
    %v300 = vmul.f32 1.0, %v299
    %v301 = vmul.f32 %v298, %v223
    %v302 = vmul.f32 %v300, %v226
    %303 = vst.msk [vmem:[#allocation2] sm:$0xff] %vm74, %v301
    %304 = vst.msk [vmem:[#allocation2 + $0x8] sm:$0xff] %vm74, %v302
    // Predicated region
    $region30: #{tpu_custom_call.1} parent=1 // pred_check
      _
    $region31: #{tpu_custom_call.1} parent=1 // pred_check_branch
      %306 = sbr.rel (0) target = $region33
    $region32: #{tpu_custom_call.1} parent=1 // pred_region
      %s308 = ssub.s32 256, 256
      %309 = vsyncadd [#allocation3], %s308
      %s310 = sshll.u32 [#allocation2], 4
      %s311 = int_to_ptr.vmem [resolvable:$true] %s310
      %316 = dma.vmem_to_hbm [thread:$0]  %s311, 256, %s7, [#allocation3], 128, 128, 8
    $region33: #{tpu_custom_call.1} parent=1 // pred_fallthru
      _
    // Predicated region
    $region34: #{tpu_custom_call.1} parent=1 // pred_check
      _
    $region35: #{tpu_custom_call.1} parent=1 // pred_check_branch
      %318 = sbr.rel (0) target = $region37
    $region36: #{tpu_custom_call.1} parent=1 // pred_region
      %319 = dma.done [#allocation3], 256
    $region37: #{tpu_custom_call.1} parent=1 // pred_fallthru
      _
    %320 = vsyncpa [#allocation3], 1

// kernel: tpu_custom_call.1
$region0: #{tpu_custom_call.1}
  #allocation0 [shape = 'u32[]', space=smem, size = 0x4, offset = 0x4, fixed_abs, tag = 'smem constant byte address 0x4 - core index']
  #allocation1 [shape = 'u32[144,128]{1,0:T(1,128)}', space=vmem, size = 0x12000, scoped, tag = 'internal scratch']
  %s0 = inlined_call_operand.vmem [shape: f32[16,32], index: 0, kind: input, shape index: {}]
  %s1 = inlined_call_operand.vmem [shape: f32[16,32], index: 1, kind: input, shape index: {}]
  %s2 = inlined_call_operand.vmem [shape: f32[1,32], index: 2, kind: input, shape index: {}]
  %s3 = inlined_call_operand.vmem [shape: f32[1,32], index: 3, kind: input, shape index: {}]
  %s4 = inlined_call_operand.vmem [shape: bf16[32,128], index: 4, kind: input, shape index: {}]
  %s5 = inlined_call_operand.vmem [shape: bf16[32,32], index: 5, kind: input, shape index: {}]
  %s6 = inlined_call_operand.vmem [shape: bf16[128,32], index: 6, kind: input, shape index: {}]
  %s7 = inlined_call_operand.hbm [shape: f32[16,32], index: 7, kind: output, shape index: {}]
  %s8 = sld [smem:[#allocation0]]
  $region38: #{tpu_custom_call.1} parent=0
    _
  %s10 = ssub.s32 1, %s8
  %s11 = scalar_select 0, %s10, %s8
  $region1: #{tpu_custom_call.1} parent=0
    #allocation2 [shape = 'u8[8192]{0}', space=vmem, size = 0x2000, scoped, tag = 'output window, operand 0, single buffered']
    #allocation3 [shape = 's32[1]{0}', space=sflag, size = 0x4, scoped, tag = 'scoped memory for tpu_custom_call.1']
    %12 = vsyncpa [#allocation3], 0
    // Predicated region
    $region2: #{tpu_custom_call.1} parent=1 // pred_check
      _
    $region3: #{tpu_custom_call.1} parent=1 // pred_check_branch
      %14 = sbr.rel (0) target = $region5
    $region4: #{tpu_custom_call.1} parent=1 // pred_region
      _
    $region5: #{tpu_custom_call.1} parent=1 // pred_fallthru
      _
    // Predicated region
    $region6: #{tpu_custom_call.1} parent=1 // pred_check
      _
    $region7: #{tpu_custom_call.1} parent=1 // pred_check_branch
      %16 = sbr.rel (0) target = $region9
    $region8: #{tpu_custom_call.1} parent=1 // pred_region
      _
    $region9: #{tpu_custom_call.1} parent=1 // pred_fallthru
      _
    // Predicated region
    $region10: #{tpu_custom_call.1} parent=1 // pred_check
      _
    $region11: #{tpu_custom_call.1} parent=1 // pred_check_branch
      %18 = sbr.rel (0) target = $region13
    $region12: #{tpu_custom_call.1} parent=1 // pred_region
      _
    $region13: #{tpu_custom_call.1} parent=1 // pred_fallthru
      _
    // Predicated region
    $region14: #{tpu_custom_call.1} parent=1 // pred_check
      _
    $region15: #{tpu_custom_call.1} parent=1 // pred_check_branch
      %20 = sbr.rel (0) target = $region17
    $region16: #{tpu_custom_call.1} parent=1 // pred_region
      _
    $region17: #{tpu_custom_call.1} parent=1 // pred_fallthru
      _
    // Predicated region
    $region18: #{tpu_custom_call.1} parent=1 // pred_check
      _
    $region19: #{tpu_custom_call.1} parent=1 // pred_check_branch
      %22 = sbr.rel (0) target = $region21
    $region20: #{tpu_custom_call.1} parent=1 // pred_region
      _
    $region21: #{tpu_custom_call.1} parent=1 // pred_fallthru
      _
    // Predicated region
    $region22: #{tpu_custom_call.1} parent=1 // pred_check
      _
    $region23: #{tpu_custom_call.1} parent=1 // pred_check_branch
      %24 = sbr.rel (0) target = $region25
    $region24: #{tpu_custom_call.1} parent=1 // pred_region
      _
    $region25: #{tpu_custom_call.1} parent=1 // pred_fallthru
      _
    // Predicated region
    $region26: #{tpu_custom_call.1} parent=1 // pred_check
      _
    $region27: #{tpu_custom_call.1} parent=1 // pred_check_branch
      %26 = sbr.rel (0) target = $region29
    $region28: #{tpu_custom_call.1} parent=1 // pred_region
      _
    $region29: #{tpu_custom_call.1} parent=1 // pred_fallthru
      _
    %v28 = vld [vmem:[%s0] sm:$0xff]
    %v29 = vld [vmem:[%s0 + $0x8] sm:$0xff]
    %v30 = vld [vmem:[%s1] sm:$0xff]
    %v31 = vld [vmem:[%s1 + $0x8] sm:$0xff]
    %v32 = vsub.f32 %v28, %v30
    %v33 = vsub.f32 %v29, %v31
    %v34 = vld [vmem:[%s2] sm:$0x1]
    %v36 = vlaneseq
    %v37 = vshrl.u32 %v36, 7
    %v38 = vsub.s32 0, %v37
    %v39 = vrot.slane %v34, %v38
    %v41 = vmul.f32 %v32, %v39
    %v42 = vmul.f32 %v33, %v39
    %v43 = vadd.f32 %v30, %v41
    %v44 = vadd.f32 %v31, %v42
    %v45 = vpack.c.bf16 %v44, %v43
    %v46 = vld [vmem:[%s3] sm:$0x1]
    %v48 = vlaneseq
    %v49 = vshrl.u32 %v48, 7
    %v50 = vsub.s32 0, %v49
    %v51 = vrot.slane %v46, %v50
    %v53 = vmul.f32 %v32, %v51
    %v54 = vmul.f32 %v33, %v51
    %v55 = vadd.f32 %v30, %v53
    %v56 = vadd.f32 %v31, %v54
    %v57 = vpack.c.bf16 %v56, %v55
    %v58 = vld [vmem:[%s4] sm:$0xf]
    %v59 = vld [vmem:[%s4 + $0x4] sm:$0xf]
    %v60 = vld [vmem:[%s4 + $0x8] sm:$0xf]
    %v61 = vld [vmem:[%s4 + $0xc] sm:$0xf]
    %v66 = vunpack.c.l.b16 %v58
    %v67 = vunpack.c.l.b16 %v59
    %v68 = vunpack.c.l.b16 %v60
    %v69 = vunpack.c.l.b16 %v61
    %v70 = vpack.c.b16 %v67, %v66
    %v71 = vpack.c.b16 %v69, %v68
    %vm74 = vcmask 261120
    %v76 = vsel %vm74, %v45, 0
    %78 = vmatprep.subr.bf16.mxu0 0
    %79 = vmatpush1.bf16.msra.mxu0 %v70
    %80 = vmatprep.subr.bf16.mxu0 0
    %81 = vmatpush1.bf16.msra.mxu0 %v71
    %82 = vmatprep.subr.bf16.mxu0 0
    %83 = vmatpush1.bf16.msra.mxu0 0
    %84 = vmatprep.subr.bf16.mxu0 0
    %85 = vmatpush1.bf16.msra.mxu0 0
    %86 = vmatprep.subr.bf16.mxu0 0
    %87 = vmatpush1.bf16.msra.mxu0 0
    %88 = vmatprep.subr.bf16.mxu0 0
    %89 = vmatpush1.bf16.msra.mxu0 0
    %90 = vmatprep.subr.bf16.mxu0 0
    %91 = vmatpush1.bf16.msra.mxu0 0
    %92 = vmatprep.subr.bf16.mxu0 0
    %93 = vmatpush1.bf16.msra.mxu0 0
    %94 = vmatprep.subr.bf16.mxu0 0
    %95 = vmatpush1.bf16.msra.mxu0 0
    %96 = vmatprep.subr.bf16.mxu0 0
    %97 = vmatpush1.bf16.msra.mxu0 0
    %98 = vmatprep.subr.bf16.mxu0 0
    %99 = vmatpush1.bf16.msra.mxu0 0
    %100 = vmatprep.subr.bf16.mxu0 0
    %101 = vmatpush1.bf16.msra.mxu0 0
    %102 = vmatprep.subr.bf16.mxu0 0
    %103 = vmatpush1.bf16.msra.mxu0 0
    %104 = vmatprep.subr.bf16.mxu0 0
    %105 = vmatpush1.bf16.msra.mxu0 0
    %106 = vmatprep.subr.bf16.mxu0 0
    %107 = vmatpush1.bf16.msra.mxu0 0
    %108 = vmatprep.subr.bf16.mxu0 0
    %109 = vmatpush1.bf16.msra.mxu0 0
    %110 = vmatprep.mubr.bf16.mxu0 0
    %111 = vmatmul.mubr.bf16.gmra.mrb[0].mxu0 %v76
    %v112 = vpop.f32.mrb[0].mxu0
    %v113 = vadd.f32 0.0, %v112
    %v114 = vpop.f32.mrb[0].mxu0
    %v115 = vpop.f32.mrb[0].mxu0
    %v116 = vadd.f32 0.0, %v115
    %v117 = vpop.f32.mrb[0].mxu0
    %118 = vdwg.mxu0
    %v119 = vmax.f32 %v113, 0.0
    %v120 = vmax.f32 %v116, 0.0
    %v121 = vmul.f32 %v119, %v119
    %v122 = vmul.f32 %v120, %v120
    %v123 = vpack.c.bf16 %v122, %v121
    %v124 = vld [vmem:[%s6] sm:$0xf]
    %v125 = vld [vmem:[%s6 + $0x4] sm:$0xf]
    %v126 = vld [vmem:[%s6 + $0x8] sm:$0xf]
    %v127 = vld [vmem:[%s6 + $0xc] sm:$0xf]
    %v128 = vld [vmem:[%s6 + $0x10] sm:$0xf]
    %v129 = vld [vmem:[%s6 + $0x14] sm:$0xf]
    %v130 = vld [vmem:[%s6 + $0x18] sm:$0xf]
    %v131 = vld [vmem:[%s6 + $0x1c] sm:$0xf]
    %v132 = vld [vmem:[%s6 + $0x20] sm:$0xf]
    %v133 = vld [vmem:[%s6 + $0x24] sm:$0xf]
    %v134 = vld [vmem:[%s6 + $0x28] sm:$0xf]
    %v135 = vld [vmem:[%s6 + $0x2c] sm:$0xf]
    %v136 = vld [vmem:[%s6 + $0x30] sm:$0xf]
    %v137 = vld [vmem:[%s6 + $0x34] sm:$0xf]
    %v138 = vld [vmem:[%s6 + $0x38] sm:$0xf]
    %v139 = vld [vmem:[%s6 + $0x3c] sm:$0xf]
    %v156 = vunpack.c.l.b16 %v124
    %v157 = vunpack.c.l.b16 %v125
    %v158 = vunpack.c.l.b16 %v126
    %v159 = vunpack.c.l.b16 %v127
    %v160 = vunpack.c.l.b16 %v128
    %v161 = vunpack.c.l.b16 %v129
    %v162 = vunpack.c.l.b16 %v130
    %v163 = vunpack.c.l.b16 %v131
    %v164 = vunpack.c.l.b16 %v132
    %v165 = vunpack.c.l.b16 %v133
    %v166 = vunpack.c.l.b16 %v134
    %v167 = vunpack.c.l.b16 %v135
    %v168 = vunpack.c.l.b16 %v136
    %v169 = vunpack.c.l.b16 %v137
    %v170 = vunpack.c.l.b16 %v138
    %v171 = vunpack.c.l.b16 %v139
    %v172 = vpack.c.b16 %v157, %v156
    %v173 = vpack.c.b16 %v159, %v158
    %v174 = vpack.c.b16 %v161, %v160
    %v175 = vpack.c.b16 %v163, %v162
    %v176 = vpack.c.b16 %v165, %v164
    %v177 = vpack.c.b16 %v167, %v166
    %v178 = vpack.c.b16 %v169, %v168
    %v179 = vpack.c.b16 %v171, %v170
    %188 = vmatprep.subr.bf16.mxu0 0
    %189 = vmatpush1.bf16.msra.mxu0 %v172
    %190 = vmatprep.subr.bf16.mxu0 0
    %191 = vmatpush1.bf16.msra.mxu0 %v173
    %192 = vmatprep.subr.bf16.mxu0 0
    %193 = vmatpush1.bf16.msra.mxu0 %v174
    %194 = vmatprep.subr.bf16.mxu0 0
    %195 = vmatpush1.bf16.msra.mxu0 %v175
    %196 = vmatprep.subr.bf16.mxu0 0
    %197 = vmatpush1.bf16.msra.mxu0 %v176
    %198 = vmatprep.subr.bf16.mxu0 0
    %199 = vmatpush1.bf16.msra.mxu0 %v177
    %200 = vmatprep.subr.bf16.mxu0 0
    %201 = vmatpush1.bf16.msra.mxu0 %v178
    %202 = vmatprep.subr.bf16.mxu0 0
    %203 = vmatpush1.bf16.msra.mxu0 %v179
    %204 = vmatprep.subr.bf16.mxu0 0
    %205 = vmatpush1.bf16.msra.mxu0 0
    %206 = vmatprep.subr.bf16.mxu0 0
    %207 = vmatpush1.bf16.msra.mxu0 0
    %208 = vmatprep.subr.bf16.mxu0 0
    %209 = vmatpush1.bf16.msra.mxu0 0
    %210 = vmatprep.subr.bf16.mxu0 0
    %211 = vmatpush1.bf16.msra.mxu0 0
    %212 = vmatprep.subr.bf16.mxu0 0
    %213 = vmatpush1.bf16.msra.mxu0 0
    %214 = vmatprep.subr.bf16.mxu0 0
    %215 = vmatpush1.bf16.msra.mxu0 0
    %216 = vmatprep.subr.bf16.mxu0 0
    %217 = vmatpush1.bf16.msra.mxu0 0
    %218 = vmatprep.subr.bf16.mxu0 0
    %219 = vmatpush1.bf16.msra.mxu0 0
    %220 = vmatprep.mubr.bf16.mxu0 0
    %221 = vmatmul.mubr.bf16.gmra.mrb[0].mxu0 %v123
    %v222 = vpop.f32.mrb[0].mxu0
    %v223 = vadd.f32 0.0, %v222
    %v224 = vpop.f32.mrb[0].mxu0
    %v225 = vpop.f32.mrb[0].mxu0
    %v226 = vadd.f32 0.0, %v225
    %v227 = vpop.f32.mrb[0].mxu0
    %228 = vdwg.mxu0
    %v229 = vld [vmem:[%s5] sm:$0xf]
    %v230 = vld [vmem:[%s5 + $0x4] sm:$0xf]
    %v231 = vld [vmem:[%s5 + $0x8] sm:$0xf]
    %v232 = vld [vmem:[%s5 + $0xc] sm:$0xf]
    %v237 = vunpack.c.l.b16 %v229
    %v238 = vunpack.c.l.b16 %v230
    %v239 = vunpack.c.l.b16 %v231
    %v240 = vunpack.c.l.b16 %v232
    %v241 = vpack.c.b16 %v238, %v237
    %v242 = vpack.c.b16 %v240, %v239
    %v246 = vsel %vm74, %v57, 0
    %248 = vmatprep.subr.bf16.mxu0 0
    %249 = vmatpush1.bf16.msra.mxu0 %v241
    %250 = vmatprep.subr.bf16.mxu0 0
    %251 = vmatpush1.bf16.msra.mxu0 %v242
    %252 = vmatprep.subr.bf16.mxu0 0
    %253 = vmatpush1.bf16.msra.mxu0 0
    %254 = vmatprep.subr.bf16.mxu0 0
    %255 = vmatpush1.bf16.msra.mxu0 0
    %256 = vmatprep.subr.bf16.mxu0 0
    %257 = vmatpush1.bf16.msra.mxu0 0
    %258 = vmatprep.subr.bf16.mxu0 0
    %259 = vmatpush1.bf16.msra.mxu0 0
    %260 = vmatprep.subr.bf16.mxu0 0
    %261 = vmatpush1.bf16.msra.mxu0 0
    %262 = vmatprep.subr.bf16.mxu0 0
    %263 = vmatpush1.bf16.msra.mxu0 0
    %264 = vmatprep.subr.bf16.mxu0 0
    %265 = vmatpush1.bf16.msra.mxu0 0
    %266 = vmatprep.subr.bf16.mxu0 0
    %267 = vmatpush1.bf16.msra.mxu0 0
    %268 = vmatprep.subr.bf16.mxu0 0
    %269 = vmatpush1.bf16.msra.mxu0 0
    %270 = vmatprep.subr.bf16.mxu0 0
    %271 = vmatpush1.bf16.msra.mxu0 0
    %272 = vmatprep.subr.bf16.mxu0 0
    %273 = vmatpush1.bf16.msra.mxu0 0
    %274 = vmatprep.subr.bf16.mxu0 0
    %275 = vmatpush1.bf16.msra.mxu0 0
    %276 = vmatprep.subr.bf16.mxu0 0
    %277 = vmatpush1.bf16.msra.mxu0 0
    %278 = vmatprep.subr.bf16.mxu0 0
    %279 = vmatpush1.bf16.msra.mxu0 0
    %280 = vmatprep.mubr.bf16.mxu0 0
    %281 = vmatmul.mubr.bf16.gmra.mrb[0].mxu0 %v246
    %v282 = vpop.f32.mrb[0].mxu0
    %v283 = vadd.f32 0.0, %v282
    %v284 = vpop.f32.mrb[0].mxu0
    %v285 = vpop.f32.mrb[0].mxu0
    %v286 = vadd.f32 0.0, %v285
    %v287 = vpop.f32.mrb[0].mxu0
    %288 = vdwg.mxu0
    %v289 = vxor.u32 %v283, 2147483648
    %v290 = vxor.u32 %v286, 2147483648
    %v291 = vmul.f32 %v289, 1.442695
    %v292 = vpow.pop %v291
    %v293 = vmul.f32 %v290, 1.442695
    %v294 = vpow.pop %v293
    %v295 = vadd.f32 %v292, 1.0
    %v296 = vadd.f32 %v294, 1.0
    %v297 = vrcp.pop %v295
    %v298 = vmul.f32 1.0, %v297
    %v299 = vrcp.pop %v296
    %v300 = vmul.f32 1.0, %v299
    %v301 = vmul.f32 %v298, %v223
    %v302 = vmul.f32 %v300, %v226
    %303 = vst.msk [vmem:[#allocation2] sm:$0xff] %vm74, %v301
    %304 = vst.msk [vmem:[#allocation2 + $0x8] sm:$0xff] %vm74, %v302
    // Predicated region
    $region30: #{tpu_custom_call.1} parent=1 // pred_check
      _
    $region31: #{tpu_custom_call.1} parent=1 // pred_check_branch
      %306 = sbr.rel (0) target = $region33
    $region32: #{tpu_custom_call.1} parent=1 // pred_region
      %s308 = ssub.s32 256, 256
      %309 = vsyncadd [#allocation3], %s308
      %s310 = sshll.u32 [#allocation2], 4
      %s311 = int_to_ptr.vmem [resolvable:$true] %s310
      %316 = dma.vmem_to_hbm [thread:$0]  %s311, 256, %s7, [#allocation3], 128, 128, 8
    $region33: #{tpu_custom_call.1} parent=1 // pred_fallthru
      _
    // Predicated region
    $region34: #{tpu_custom_call.1} parent=1 // pred_check
      _
    $region35: #{tpu_custom_call.1} parent=1 // pred_check_branch
      %318 = sbr.rel (0) target = $region37
    $region36: #{tpu_custom_call.1} parent=1 // pred_region
      %319 = dma.done [#allocation3], 256
    $region37: #{tpu_custom_call.1} parent=1 // pred_fallthru
      _
    %320 = vsyncpa [#allocation3], 1

</llo_original>
